<compile_context>
chip_gen: v7x
topology: tpu7x:2x2x1
jax: 0.10.0
libtpu: 0.0.40
codegen_flags: <defaults>
</compile_context>

<pallas_src>
import math

import jax
import jax.numpy as jnp
from jax import lax
from jax.experimental import pallas as pl
from jax.experimental.pallas import tpu as pltpu


# ------------------------------- kernel -------------------------------------


def _span_cls_kernel(x_ref, m_ref, o_ref):
    # x_ref: (tm, H)  token tile (pipelined over the grid)
    # m_ref: (C, H)   fused weight M = W2 @ W1 (constant index -> resident)
    # o_ref: (tm, C)  output tile in the natural [..., C] layout
    #
    # Contraction is over H, the LAST axis of both operands, so no transpose is
    # materialized in VMEM; the MXU accumulates in f32.
    out = lax.dot_general(
        x_ref[...],
        m_ref[...],
        dimension_numbers=(((1,), (1,)), ((), ())),
        preferred_element_type=jnp.float32,
    )
    o_ref[...] = out.astype(o_ref.dtype)


# ----------------------------- tiling helpers --------------------------------


def _round_up(x, m):
    return ((x + m - 1) // m) * m


def _round_down(x, m):
    return max(m, (x // m) * m)


def _vmem_capacity_bytes():
    # Generation-aware VMEM capacity (128 MiB on v5e/v6e, 64 MiB on v7x).
    try:
        cap = int(pltpu.get_tpu_info().vmem_capacity_bytes)
        if cap > 0:
            return cap
    except Exception:
        pass
    return 64 * 1024 * 1024  # conservative default (v7x per-TensorCore)


def _pick_tm(n_tokens, h, c, x_bytes, out_bytes, vmem_cap):
    """Token-tile rows: sized by bytes, 128-aligned, VMEM- and megacore-aware."""
    n_pad = _round_up(max(n_tokens, 1), 128)

    # Byte-targeted tile: ~vmem_cap/16 of X per buffer (8 MiB on v5e/v6e,
    # 4 MiB on v7x). Measured tiling data puts the HBM-roofline knee at
    # ~1-4 MiB tiles; per-grid-step overhead (~0.35us) is then negligible.
    target_bytes = max(1 << 20, vmem_cap // 16)
    tm = _round_down(target_bytes // max(1, h * x_bytes), 128)

    # Keep the double-buffered X + output tiles well under physical VMEM.
    per_row = 2 * h * x_bytes + 2 * c * out_bytes
    tm = min(tm, _round_down((vmem_cap // 3) // max(1, per_row), 128))

    # Never larger than the (padded) token extent.
    tm = min(tm, n_pad)

    # Megacore (v7x): if there is more than one 128-row token tile, keep at
    # least two grid steps so both TensorCores get work.
    if n_pad >= 256:
        tm = min(tm, _round_up((n_pad + 1) // 2, 128))

    return max(tm, 128)


# ------------------------------- wrappers ------------------------------------


def fuse_span_cls_weights(w1, w2, dtype=None):
    """M = W2 @ W1 — exact fusion of the two bias-free Linears.

    Compute once at weight-load time (or let it constant-fold under jit) and
    pass the result to simple_span_cls_head(..., fused_weight=M) so the H*H
    weight read + C*H*H matmul is not repeated every forward call.
    """
    m = jnp.dot(
        w2.astype(jnp.float32),
        w1.astype(jnp.float32),
        preferred_element_type=jnp.float32,
    )
    return m.astype(w2.dtype if dtype is None else dtype)


def simple_span_cls_head(features, w1=None, w2=None, *, fused_weight=None, tm=None):
    """features: [..., H]; w1: [H, H] = head_1.weight; w2: [C, H] = head_2.weight.

    Matches PyTorch head_2(head_1(features)) (both Linears bias=False).
    Features are consumed in their native dtype (pass bf16 features from the
    producer to halve HBM read traffic); accumulation is always f32.
    """
    if fused_weight is None:
        fused_weight = fuse_span_cls_weights(w1, w2)

    orig_shape = features.shape
    H = orig_shape[-1]
    C = fused_weight.shape[0]
    out_dtype = features.dtype

    x = features.reshape(-1, H)            # [N, H], native dtype — no cast pass
    m = fused_weight.astype(x.dtype)       # tiny [C, H]
    N = x.shape[0]

    x_bytes = jnp.dtype(x.dtype).itemsize
    out_bytes = jnp.dtype(out_dtype).itemsize
    vmem_cap = _vmem_capacity_bytes()

    if tm is None:
        tm = _pick_tm(N, H, C, x_bytes, out_bytes, vmem_cap)
    grid = (pl.cdiv(N, tm),)

    # VMEM budget: double-buffered X tile + double-buffered output tile +
    # fused weight; 2x slack, always below the physical per-core capacity.
    est = 2 * tm * H * x_bytes + 2 * tm * C * out_bytes + 2 * C * H * x_bytes
    vmem_limit = int(min(vmem_cap - (4 << 20), max(16 << 20, 2 * est)))

    cost = pl.CostEstimate(
        flops=2 * N * H * C,
        transcendentals=0,
        bytes_accessed=N * H * x_bytes + C * H * x_bytes + N * C * out_bytes,
    )

    def build(single_buffer_weight):
        w_kwargs = (
            {"pipeline_mode": pl.Buffered(1)} if single_buffer_weight else {}
        )
        return pl.pallas_call(
            _span_cls_kernel,
            out_shape=jax.ShapeDtypeStruct((N, C), out_dtype),
            grid_spec=pltpu.PrefetchScalarGridSpec(
                num_scalar_prefetch=0,
                grid=grid,
                in_specs=[
                    # X tile, pipelined over tokens. Depth-2 buffering is enough
                    # once the tile is multi-MiB (bandwidth-, not issue-latency-
                    # bound).
                    # TODO(synk): prefetch depth > 2 on X needs manual DMA /
                    # emit_pipeline; not worth it at these tile sizes.
                    pl.BlockSpec((tm, H), lambda i: (i, 0)),
                    # Fused weight: constant index -> fetched once, resident.
                    pl.BlockSpec((C, H), lambda i: (0, 0), **w_kwargs),
                ],
                out_specs=pl.BlockSpec((tm, C), lambda i: (i, 0)),
            ),
            compiler_params=pltpu.CompilerParams(
                dimension_semantics=("parallel",),
                vmem_limit_bytes=vmem_limit,
            ),
            cost_estimate=cost,
        )

    try:
        # Single-buffer the constant-index weight (double-buffering it wastes
        # C*H*itemsize of VMEM for nothing).
        out = build(True)(x, m)
    except Exception:
        # jax builds without BlockSpec.pipeline_mode support: plain spec.
        out = build(False)(x, m)

    return out.reshape(orig_shape[:-1] + (C,))


# ------------------------------- demo / test ---------------------------------


def xavier_uniform(key, shape, dtype=jnp.float32):
    # nn.init.xavier_uniform_ for a (fan_out, fan_in) Linear weight.
    fan_out, fan_in = shape
    bound = math.sqrt(6.0 / (fan_in + fan_out))
    return jax.random.uniform(key, shape, dtype=dtype, minval=-bound, maxval=bound)


if __name__ == "__main__":
    # SimpleSpanCLSHead(hidden_dim=32, n_class=4) on features [batch=2, seq=8, 32]
    hidden_dim = 32
    n_class = 4
    batch, seq = 2, 8

    key = jax.random.PRNGKey(0)
    k_x, k_w1, k_w2 = jax.random.split(key, 3)

    features = jax.random.normal(k_x, (batch, seq, hidden_dim), dtype=jnp.float32)
    w1 = xavier_uniform(k_w1, (hidden_dim, hidden_dim))  # head_1.weight
    w2 = xavier_uniform(k_w2, (n_class, hidden_dim))     # head_2.weight

    # Reference: exact PyTorch forward (two unfused matmuls) in plain JAX.
    ref = (features @ w1.T) @ w2.T

    # Path 1: pass raw weights (fusion happens once inside the wrapper).
    out = simple_span_cls_head(features, w1, w2)
    out = jax.block_until_ready(out)
    assert out.shape == (batch, seq, n_class)
    assert jnp.allclose(out, ref, atol=1e-4, rtol=1e-4)

    # Path 2: precomputed fused weight, reused across calls (the recommended
    # production path — weight fusion amortized at load time).
    m_fused = fuse_span_cls_weights(w1, w2)
    out2 = simple_span_cls_head(features, fused_weight=m_fused)
    out2 = jax.block_until_ready(out2)
    assert jnp.allclose(out2, ref, atol=1e-4, rtol=1e-4)

    # Path 3: bf16 features from the producer (true halved HBM read traffic —
    # no wrapper-side cast pass), f32 accumulation; loose tolerance.
    feats_bf16 = features.astype(jnp.bfloat16)
    out_bf16 = simple_span_cls_head(
        feats_bf16, fused_weight=fuse_span_cls_weights(w1, w2, dtype=jnp.bfloat16)
    )
    out_bf16 = jax.block_until_ready(out_bf16)
    assert out_bf16.shape == (batch, seq, n_class)
    assert out_bf16.dtype == jnp.bfloat16
    assert jnp.allclose(out_bf16.astype(jnp.float32), ref, atol=2e-1, rtol=5e-2)

    print("KERNEL_OK")
</pallas_src>

<mosaic_0001>
module attributes {stable_mosaic.version = 11 : i64} {
  func.func @_span_cls_kernel(%arg0: i32, %arg1: memref<128x32xf32, #tpu.memory_space<vmem>>, %arg2: memref<4x32xf32, #tpu.memory_space<vmem>>, %arg3: memref<128x4xf32, #tpu.memory_space<vmem>>) attributes {dimension_semantics = [#tpu.dimension_semantics<parallel>], iteration_bounds = array<i64: 1>, scalar_prefetch = 0 : i64, scratch_operands = 0 : i64, tpu.core_type = #tpu.core_type<tc>, window_params = [{transform_indices = @transform_0, window_bounds = array<i64: 128, 32>}, {pipeline_mode = #tpu.pipeline_mode<synchronous>, transform_indices = @transform_1, window_bounds = array<i64: 4, 32>}, {transform_indices = @transform_2, window_bounds = array<i64: 128, 4>}]} {
    %c0 = arith.constant 0 : index
    %c0_0 = arith.constant 0 : index
    %0 = vector.load %arg1[%c0, %c0_0] : memref<128x32xf32, #tpu.memory_space<vmem>>, vector<128x32xf32>
    %c0_1 = arith.constant 0 : index
    %c0_2 = arith.constant 0 : index
    %1 = vector.load %arg2[%c0_1, %c0_2] : memref<4x32xf32, #tpu.memory_space<vmem>>, vector<4x32xf32>
    %cst = arith.constant dense<0.000000e+00> : vector<128x4xf32>
    %2 = tpu.matmul %0, %1, %cst {dimension_numbers = #tpu.dot_dimension_numbers<[1], [1], [0], [0], [0, 0, 1, 0], [], []>} : vector<128x32xf32>, vector<4x32xf32>, vector<128x4xf32> -> vector<128x4xf32>
    %c0_3 = arith.constant 0 : index
    %c0_4 = arith.constant 0 : index
    %3 = vector.load %arg3[%c0_3, %c0_4] : memref<128x4xf32, #tpu.memory_space<vmem>>, vector<128x4xf32>
    tpu.vector_store %arg3[%c0_3, %c0_4], %2 {strides = array<i32>} : memref<128x4xf32, #tpu.memory_space<vmem>>, vector<128x4xf32>,
    return
  }
  func.func @transform_0(%arg0: i32) -> (i32, i32) {
    %c0_i32 = arith.constant 0 : i32
    %c0_i32_0 = arith.constant 0 : i32
    return %arg0, %c0_i32 : i32, i32
  }
  func.func @transform_1(%arg0: i32) -> (i32, i32) {
    %c0_i32 = arith.constant 0 : i32
    %c0_i32_0 = arith.constant 0 : i32
    %c0_i32_1 = arith.constant 0 : i32
    return %c0_i32, %c0_i32_0 : i32, i32
  }
  func.func @transform_2(%arg0: i32) -> (i32, i32) {
    %c0_i32 = arith.constant 0 : i32
    %c0_i32_0 = arith.constant 0 : i32
    return %arg0, %c0_i32 : i32, i32
  }
}

module attributes {stable_mosaic.version = 11 : i64} {
  func.func @_span_cls_kernel(%arg0: i32, %arg1: memref<128x32xf32, #tpu.memory_space<vmem>>, %arg2: memref<4x32xf32, #tpu.memory_space<vmem>>, %arg3: memref<128x4xf32, #tpu.memory_space<vmem>>) attributes {dimension_semantics = [#tpu.dimension_semantics<parallel>], iteration_bounds = array<i64: 1>, scalar_prefetch = 0 : i64, scratch_operands = 0 : i64, tpu.core_type = #tpu.core_type<tc>, window_params = [{transform_indices = @transform_0, window_bounds = array<i64: 128, 32>}, {pipeline_mode = #tpu.pipeline_mode<synchronous>, transform_indices = @transform_1, window_bounds = array<i64: 4, 32>}, {transform_indices = @transform_2, window_bounds = array<i64: 128, 4>}]} {
    %c0 = arith.constant 0 : index
    %c0_0 = arith.constant 0 : index
    %0 = vector.load %arg1[%c0, %c0_0] : memref<128x32xf32, #tpu.memory_space<vmem>>, vector<128x32xf32>
    %c0_1 = arith.constant 0 : index
    %c0_2 = arith.constant 0 : index
    %1 = vector.load %arg2[%c0_1, %c0_2] : memref<4x32xf32, #tpu.memory_space<vmem>>, vector<4x32xf32>
    %cst = arith.constant dense<0.000000e+00> : vector<128x4xf32>
    %2 = tpu.matmul %0, %1, %cst {dimension_numbers = #tpu.dot_dimension_numbers<[1], [1], [0], [0], [0, 0, 1, 0], [], []>} : vector<128x32xf32>, vector<4x32xf32>, vector<128x4xf32> -> vector<128x4xf32>
    %c0_3 = arith.constant 0 : index
    %c0_4 = arith.constant 0 : index
    %3 = vector.load %arg3[%c0_3, %c0_4] : memref<128x4xf32, #tpu.memory_space<vmem>>, vector<128x4xf32>
    tpu.vector_store %arg3[%c0_3, %c0_4], %2 {strides = array<i32>} : memref<128x4xf32, #tpu.memory_space<vmem>>, vector<128x4xf32>,
    return
  }
  func.func @transform_0(%arg0: i32) -> (i32, i32) {
    %c0_i32 = arith.constant 0 : i32
    %c0_i32_0 = arith.constant 0 : i32
    return %arg0, %c0_i32 : i32, i32
  }
  func.func @transform_1(%arg0: i32) -> (i32, i32) {
    %c0_i32 = arith.constant 0 : i32
    %c0_i32_0 = arith.constant 0 : i32
    %c0_i32_1 = arith.constant 0 : i32
    return %c0_i32, %c0_i32_0 : i32, i32
  }
  func.func @transform_2(%arg0: i32) -> (i32, i32) {
    %c0_i32 = arith.constant 0 : i32
    %c0_i32_0 = arith.constant 0 : i32
    return %arg0, %c0_i32 : i32, i32
  }
}

</mosaic_0001>

<llo_original>
// kernel: tpu_custom_call.1
$region0: #{tpu_custom_call.1}
  #allocation0 [shape = 'u32[]', space=smem, size = 0x4, offset = 0x4, fixed_abs, tag = 'smem constant byte address 0x4 - core index']
  #allocation1 [shape = 'u32[144,128]{1,0:T(1,128)}', space=vmem, size = 0x12000, scoped, tag = 'internal scratch']
  %s0 = inlined_call_operand.hbm [shape: f32[16,32], index: 0, kind: input, shape index: {}]
  %s1 = inlined_call_operand.hbm [shape: f32[4,32], index: 1, kind: input, shape index: {}]
  %s2 = inlined_call_operand.vmem [shape: f32[16,4], index: 2, kind: output, shape index: {}]
  %s3 = sld [smem:[#allocation0]]
  $region60: #{tpu_custom_call.1} parent=0
    _
  %s5 = ssub.s32 1, %s3
  %s6 = scalar_select 0, %s5, %s3
  $region1: #{tpu_custom_call.1} parent=0
    #allocation2 [shape = 'u8[65536]{0}', space=vmem, size = 0x10000, scoped, tag = 'input window, operand 0, single buffered']
    #allocation3 [shape = 's32[1]{0}', space=sflag, size = 0x4, scoped, tag = 'scoped memory for tpu_custom_call.1']
    #allocation4 [shape = 'u8[2048]{0}', space=vmem, size = 0x800, scoped, tag = 'input window, operand 1, single buffered']
    #allocation5 [shape = 's32[1]{0}', space=sflag, size = 0x4, scoped, tag = 'scoped memory for tpu_custom_call.1']
    #allocation6 [shape = 'u8[65536]{0}', space=vmem, size = 0x10000, scoped, tag = 'output window, operand 0, single buffered']
    %7 = vsyncpa [#allocation3], 0
    %8 = vsyncpa [#allocation5], 0
    // Predicated region
    $region2: #{tpu_custom_call.1} parent=1 // pred_check
      _
    $region3: #{tpu_custom_call.1} parent=1 // pred_check_branch
      %10 = sbr.rel (0) target = $region5
    $region4: #{tpu_custom_call.1} parent=1 // pred_region
      %s12 = ssub.s32 2048, 256
      %13 = vsyncadd [#allocation3], %s12
      %s14 = sshll.u32 [#allocation2], 4
      %s15 = int_to_ptr.vmem [resolvable:$true] %s14
      %20 = dma.hbm_to_vmem [thread:$0]  %s0, 256, %s15, [#allocation3], 128, 128, 8
    $region5: #{tpu_custom_call.1} parent=1 // pred_fallthru
      _
    // Predicated region
    $region6: #{tpu_custom_call.1} parent=1 // pred_check
      _
    $region7: #{tpu_custom_call.1} parent=1 // pred_check_branch
      %22 = sbr.rel (0) target = $region9
    $region8: #{tpu_custom_call.1} parent=1 // pred_region
      %s24 = ssub.s32 64, 64
      %25 = vsyncadd [#allocation5], %s24
      %s27 = sshll.u32 [#allocation4], 4
      %s28 = int_to_ptr.vmem [resolvable:$true] %s27
      %30 = dma.hbm_to_vmem [thread:$0]  %s1, 64, %s28, [#allocation5]
    $region9: #{tpu_custom_call.1} parent=1 // pred_fallthru
      _
    // Predicated region
    $region10: #{tpu_custom_call.1} parent=1 // pred_check
      _
    $region11: #{tpu_custom_call.1} parent=1 // pred_check_branch
      %32 = sbr.rel (0) target = $region13
    $region12: #{tpu_custom_call.1} parent=1 // pred_region
      %33 = dma.done [#allocation3], 2048
    $region13: #{tpu_custom_call.1} parent=1 // pred_fallthru
      _
    // Predicated region
    $region14: #{tpu_custom_call.1} parent=1 // pred_check
      _
    $region15: #{tpu_custom_call.1} parent=1 // pred_check_branch
      %35 = sbr.rel (0) target = $region17
    $region16: #{tpu_custom_call.1} parent=1 // pred_region
      %36 = dma.done [#allocation5], 64
    $region17: #{tpu_custom_call.1} parent=1 // pred_fallthru
      _
    %v37 = vld [vmem:[#allocation2] sm:$0xff]
    %v38 = vld [vmem:[#allocation2 + $0x8] sm:$0xff]
    %v39 = vld [vmem:[#allocation2 + $0x10] sm:$0xff]
    %v40 = vld [vmem:[#allocation2 + $0x18] sm:$0xff]
    %v41 = vld [vmem:[#allocation2 + $0x20] sm:$0xff]
    %v42 = vld [vmem:[#allocation2 + $0x28] sm:$0xff]
    %v43 = vld [vmem:[#allocation2 + $0x30] sm:$0xff]
    %v44 = vld [vmem:[#allocation2 + $0x38] sm:$0xff]
    %v45 = vld [vmem:[#allocation2 + $0x40] sm:$0xff]
    %v46 = vld [vmem:[#allocation2 + $0x48] sm:$0xff]
    %v47 = vld [vmem:[#allocation2 + $0x50] sm:$0xff]
    %v48 = vld [vmem:[#allocation2 + $0x58] sm:$0xff]
    %v49 = vld [vmem:[#allocation2 + $0x60] sm:$0xff]
    %v50 = vld [vmem:[#allocation2 + $0x68] sm:$0xff]
    %v51 = vld [vmem:[#allocation2 + $0x70] sm:$0xff]
    %v52 = vld [vmem:[#allocation2 + $0x78] sm:$0xff]
    %v53 = vld [vmem:[#allocation4] sm:$0xf]
    %vm54 = vcmask 261120
    %v56 = vsel %vm54, %v37, 0
    %v59 = vsel %vm54, %v38, 0
    %v62 = vsel %vm54, %v39, 0
    %v65 = vsel %vm54, %v40, 0
    %v68 = vsel %vm54, %v41, 0
    %v71 = vsel %vm54, %v42, 0
    %v74 = vsel %vm54, %v43, 0
    %v77 = vsel %vm54, %v44, 0
    %v80 = vsel %vm54, %v45, 0
    %v83 = vsel %vm54, %v46, 0
    %v86 = vsel %vm54, %v47, 0
    %v89 = vsel %vm54, %v48, 0
    %v92 = vsel %vm54, %v49, 0
    %v95 = vsel %vm54, %v50, 0
    %v98 = vsel %vm54, %v51, 0
    %v101 = vsel %vm54, %v52, 0
    %v104 = vsel %vm54, %v53, 0
    %106 = vmatprep.subr.mxu0 0.0
    %107 = vmatpush1.xpose.msra.mxu0 %v104
    %108 = vmatprep.subr.mxu0 0.0
    %109 = vmatpush1.xpose.msra.mxu0 0.0
    %110 = vmatprep.subr.mxu0 0.0
    %111 = vmatpush1.xpose.msra.mxu0 0.0
    %112 = vmatprep.subr.mxu0 0.0
    %113 = vmatpush1.xpose.msra.mxu0 0.0
    %114 = vmatprep.subr.mxu0 0.0
    %115 = vmatpush1.xpose.msra.mxu0 0.0
    %116 = vmatprep.subr.mxu0 0.0
    %117 = vmatpush1.xpose.msra.mxu0 0.0
    %118 = vmatprep.subr.mxu0 0.0
    %119 = vmatpush1.xpose.msra.mxu0 0.0
    %120 = vmatprep.subr.mxu0 0.0
    %121 = vmatpush1.xpose.msra.mxu0 0.0
    %122 = vmatprep.subr.mxu0 0.0
    %123 = vmatpush1.xpose.msra.mxu0 0.0
    %124 = vmatprep.subr.mxu0 0.0
    %125 = vmatpush1.xpose.msra.mxu0 0.0
    %126 = vmatprep.subr.mxu0 0.0
    %127 = vmatpush1.xpose.msra.mxu0 0.0
    %128 = vmatprep.subr.mxu0 0.0
    %129 = vmatpush1.xpose.msra.mxu0 0.0
    %130 = vmatprep.subr.mxu0 0.0
    %131 = vmatpush1.xpose.msra.mxu0 0.0
    %132 = vmatprep.subr.mxu0 0.0
    %133 = vmatpush1.xpose.msra.mxu0 0.0
    %134 = vmatprep.subr.mxu0 0.0
    %135 = vmatpush1.xpose.msra.mxu0 0.0
    %136 = vmatprep.subr.mxu0 0.0
    %137 = vmatpush1.xpose.msra.mxu0 0.0
    %138 = vmatprep.subr.mxu0 0.0
    %139 = vmatpush1.xpose.msra.mxu0 0.0
    %140 = vmatprep.subr.mxu0 0.0
    %141 = vmatpush1.xpose.msra.mxu0 0.0
    %142 = vmatprep.subr.mxu0 0.0
    %143 = vmatpush1.xpose.msra.mxu0 0.0
    %144 = vmatprep.subr.mxu0 0.0
    %145 = vmatpush1.xpose.msra.mxu0 0.0
    %146 = vmatprep.subr.mxu0 0.0
    %147 = vmatpush1.xpose.msra.mxu0 0.0
    %148 = vmatprep.subr.mxu0 0.0
    %149 = vmatpush1.xpose.msra.mxu0 0.0
    %150 = vmatprep.subr.mxu0 0.0
    %151 = vmatpush1.xpose.msra.mxu0 0.0
    %152 = vmatprep.subr.mxu0 0.0
    %153 = vmatpush1.xpose.msra.mxu0 0.0
    %154 = vmatprep.subr.mxu0 0.0
    %155 = vmatpush1.xpose.msra.mxu0 0.0
    %156 = vmatprep.subr.mxu0 0.0
    %157 = vmatpush1.xpose.msra.mxu0 0.0
    %158 = vmatprep.subr.mxu0 0.0
    %159 = vmatpush1.xpose.msra.mxu0 0.0
    %160 = vmatprep.subr.mxu0 0.0
    %161 = vmatpush1.xpose.msra.mxu0 0.0
    %162 = vmatprep.subr.mxu0 0.0
    %163 = vmatpush1.xpose.msra.mxu0 0.0
    %164 = vmatprep.subr.mxu0 0.0
    %165 = vmatpush1.xpose.msra.mxu0 0.0
    %166 = vmatprep.subr.mxu0 0.0
    %167 = vmatpush1.xpose.msra.mxu0 0.0
    %168 = vmatprep.subr.mxu0 0.0
    %169 = vmatpush1.xpose.msra.mxu0 0.0
    %170 = vmatprep.mubr.f32.mxu0 0.0
    %171 = vmatmul.mubr.f32.gmra.mrb[0].mxu0 %v56
    %v172 = vpop.f32.mrb[0].mxu0
    %v173 = vadd.f32 0.0, %v172
    %v174 = vpop.f32.mrb[0].mxu0
    %175 = vmatprep.mubr.f32.mxu0 0.0
    %176 = vmatmul.mubr.f32.gmra.mrb[0].mxu0 %v59
    %v177 = vpop.f32.mrb[0].mxu0
    %v178 = vadd.f32 0.0, %v177
    %v179 = vpop.f32.mrb[0].mxu0
    %180 = vmatprep.mubr.f32.mxu0 0.0
    %181 = vmatmul.mubr.f32.gmra.mrb[0].mxu0 %v62
    %v182 = vpop.f32.mrb[0].mxu0
    %v183 = vadd.f32 0.0, %v182
    %v184 = vpop.f32.mrb[0].mxu0
    %185 = vmatprep.mubr.f32.mxu0 0.0
    %186 = vmatmul.mubr.f32.gmra.mrb[0].mxu0 %v65
    %v187 = vpop.f32.mrb[0].mxu0
    %v188 = vadd.f32 0.0, %v187
    %v189 = vpop.f32.mrb[0].mxu0
    %190 = vmatprep.mubr.f32.mxu0 0.0
    %191 = vmatmul.mubr.f32.gmra.mrb[0].mxu0 %v68
    %v192 = vpop.f32.mrb[0].mxu0
    %v193 = vadd.f32 0.0, %v192
    %v194 = vpop.f32.mrb[0].mxu0
    %195 = vmatprep.mubr.f32.mxu0 0.0
    %196 = vmatmul.mubr.f32.gmra.mrb[0].mxu0 %v71
    %v197 = vpop.f32.mrb[0].mxu0
    %v198 = vadd.f32 0.0, %v197
    %v199 = vpop.f32.mrb[0].mxu0
    %200 = vmatprep.mubr.f32.mxu0 0.0
    %201 = vmatmul.mubr.f32.gmra.mrb[0].mxu0 %v74
    %v202 = vpop.f32.mrb[0].mxu0
    %v203 = vadd.f32 0.0, %v202
    %v204 = vpop.f32.mrb[0].mxu0
    %205 = vmatprep.mubr.f32.mxu0 0.0
    %206 = vmatmul.mubr.f32.gmra.mrb[0].mxu0 %v77
    %v207 = vpop.f32.mrb[0].mxu0
    %v208 = vadd.f32 0.0, %v207
    %v209 = vpop.f32.mrb[0].mxu0
    %210 = vmatprep.mubr.f32.mxu0 0.0
    %211 = vmatmul.mubr.f32.gmra.mrb[0].mxu0 %v80
    %v212 = vpop.f32.mrb[0].mxu0
    %v213 = vadd.f32 0.0, %v212
    %v214 = vpop.f32.mrb[0].mxu0
    %215 = vmatprep.mubr.f32.mxu0 0.0
    %216 = vmatmul.mubr.f32.gmra.mrb[0].mxu0 %v83
    %v217 = vpop.f32.mrb[0].mxu0
    %v218 = vadd.f32 0.0, %v217
    %v219 = vpop.f32.mrb[0].mxu0
    %220 = vmatprep.mubr.f32.mxu0 0.0
    %221 = vmatmul.mubr.f32.gmra.mrb[0].mxu0 %v86
    %v222 = vpop.f32.mrb[0].mxu0
    %v223 = vadd.f32 0.0, %v222
    %v224 = vpop.f32.mrb[0].mxu0
    %225 = vmatprep.mubr.f32.mxu0 0.0
    %226 = vmatmul.mubr.f32.gmra.mrb[0].mxu0 %v89
    %v227 = vpop.f32.mrb[0].mxu0
    %v228 = vadd.f32 0.0, %v227
    %v229 = vpop.f32.mrb[0].mxu0
    %230 = vmatprep.mubr.f32.mxu0 0.0
    %231 = vmatmul.mubr.f32.gmra.mrb[0].mxu0 %v92
    %v232 = vpop.f32.mrb[0].mxu0
    %v233 = vadd.f32 0.0, %v232
    %v234 = vpop.f32.mrb[0].mxu0
    %235 = vmatprep.mubr.f32.mxu0 0.0
    %236 = vmatmul.mubr.f32.gmra.mrb[0].mxu0 %v95
    %v237 = vpop.f32.mrb[0].mxu0
    %v238 = vadd.f32 0.0, %v237
    %v239 = vpop.f32.mrb[0].mxu0
    %240 = vmatprep.mubr.f32.mxu0 0.0
    %241 = vmatmul.mubr.f32.gmra.mrb[0].mxu0 %v98
    %v242 = vpop.f32.mrb[0].mxu0
    %v243 = vadd.f32 0.0, %v242
    %v244 = vpop.f32.mrb[0].mxu0
    %245 = vmatprep.mubr.f32.mxu0 0.0
    %246 = vmatmul.mubr.f32.gmra.mrb[0].mxu0 %v101
    %v247 = vpop.f32.mrb[0].mxu0
    %v248 = vadd.f32 0.0, %v247
    %v249 = vpop.f32.mrb[0].mxu0
    %250 = vdwg.mxu0
    %vm251 = vcmask 31744
    %252 = vst.msk [vmem:[#allocation6] sm:$0xff] %vm251, %v173
    %253 = vst.msk [vmem:[#allocation6 + $0x8] sm:$0xff] %vm251, %v178
    %254 = vst.msk [vmem:[#allocation6 + $0x10] sm:$0xff] %vm251, %v183
    %255 = vst.msk [vmem:[#allocation6 + $0x18] sm:$0xff] %vm251, %v188
    %256 = vst.msk [vmem:[#allocation6 + $0x20] sm:$0xff] %vm251, %v193
    %257 = vst.msk [vmem:[#allocation6 + $0x28] sm:$0xff] %vm251, %v198
    %258 = vst.msk [vmem:[#allocation6 + $0x30] sm:$0xff] %vm251, %v203
    %259 = vst.msk [vmem:[#allocation6 + $0x38] sm:$0xff] %vm251, %v208
    %260 = vst.msk [vmem:[#allocation6 + $0x40] sm:$0xff] %vm251, %v213
    %261 = vst.msk [vmem:[#allocation6 + $0x48] sm:$0xff] %vm251, %v218
    %262 = vst.msk [vmem:[#allocation6 + $0x50] sm:$0xff] %vm251, %v223
    %263 = vst.msk [vmem:[#allocation6 + $0x58] sm:$0xff] %vm251, %v228
    %264 = vst.msk [vmem:[#allocation6 + $0x60] sm:$0xff] %vm251, %v233
    %265 = vst.msk [vmem:[#allocation6 + $0x68] sm:$0xff] %vm251, %v238
    %266 = vst.msk [vmem:[#allocation6 + $0x70] sm:$0xff] %vm251, %v243
    %267 = vst.msk [vmem:[#allocation6 + $0x78] sm:$0xff] %vm251, %v248
    // Predicated region
    $region18: #{tpu_custom_call.1} parent=1 // pred_check
      _
    $region19: #{tpu_custom_call.1} parent=1 // pred_check_branch
      %269 = sbr.rel (0) target = $region21
    $region20: #{tpu_custom_call.1} parent=1 // pred_region
      // Predicated region
      $region22: #{tpu_custom_call.1} parent=20 // pred_check
        _
      $region23: #{tpu_custom_call.1} parent=20 // pred_check_branch
        %271 = sbr.rel (0) target = $region25
      $region24: #{tpu_custom_call.1} parent=20 // pred_region
        // Predicated region
        $region26: #{tpu_custom_call.1} parent=24 // pred_check
          _
        $region27: #{tpu_custom_call.1} parent=24 // pred_check_branch
          %273 = sbr.rel (0) target = $region29
        $region28: #{tpu_custom_call.1} parent=24 // pred_region
          // Predicated region
          $region41: #{tpu_custom_call.1} parent=28 // pred_check
            _
          $region42: #{tpu_custom_call.1} parent=28 // pred_check_branch
            %290 = sbr.rel (0) target = $region44
          $region43: #{tpu_custom_call.1} parent=28 // pred_region
            loop: start=0, step=1, limit=1
            $region45: #{tpu_custom_call.1} parent=43 // loop_pre_header
              _
            $region46: #{tpu_custom_call.1} parent=43 // loop_header
              %s292 = sphi 0, %s296
              %p293 = scmp.ge.s32.totalorder %s292, 1
              %s297 = sphi [#allocation6], [#allocation6]
              %s298 = sphi %s2, %s2
            $region47: #{tpu_custom_call.1} parent=43 // loop_header_branch
              %295 = sbr.rel (%p293) target = $region51
            $region48: #{tpu_custom_call.1} parent=43 // loop_body
              %v299 = vld [vmem:[%s297] sm:$0xff]
              %300 = vst [vmem:[%s298] sm:$0xff] %v299
              %v301 = vld [vmem:[%s297 + $0x8] sm:$0xff]
              %302 = vst [vmem:[%s298 + $0x8] sm:$0xff] %v301
            $region49: #{tpu_custom_call.1} parent=43 // loop_footer
              %s296 = sadd.s32 1, %s292
            $region50: #{tpu_custom_call.1} parent=43 // loop_footer_branch
              %291 = sbr.rel target = $region46
            $region51: #{tpu_custom_call.1} parent=43 // loop_exit
              _
          $region44: #{tpu_custom_call.1} parent=28 // pred_fallthru
            _
          // Predicated region
          $region52: #{tpu_custom_call.1} parent=28 // pred_check
            _
          $region53: #{tpu_custom_call.1} parent=28 // pred_check_branch
            %304 = sbr.rel target = $region55
          $region54: #{tpu_custom_call.1} parent=28 // pred_region
            _
          $region55: #{tpu_custom_call.1} parent=28 // pred_fallthru
            _
        $region29: #{tpu_custom_call.1} parent=24 // pred_fallthru
          _
        // Predicated region
        $region30: #{tpu_custom_call.1} parent=24 // pred_check
          _
        $region31: #{tpu_custom_call.1} parent=24 // pred_check_branch
          %275 = sbr.rel target = $region33
        $region32: #{tpu_custom_call.1} parent=24 // pred_region
          loop: start=0, step=1, limit=1
          $region34: #{tpu_custom_call.1} parent=32 // loop_pre_header
            _
          $region35: #{tpu_custom_call.1} parent=32 // loop_header
            %s278 = sphi 0, %s282
            %p279 = scmp.ge.s32.totalorder %s278, 1
            %s283 = sphi [#allocation6], [#allocation6]
            %s284 = sphi %s2, %s2
          $region36: #{tpu_custom_call.1} parent=32 // loop_header_branch
            %281 = sbr.rel (%p279) target = $region40
          $region37: #{tpu_custom_call.1} parent=32 // loop_body
            %v285 = vld [vmem:[%s283] sm:$0xff]
            %286 = vst [vmem:[%s284] sm:$0xff] %v285
            %v287 = vld [vmem:[%s283 + $0x8] sm:$0xff]
            %288 = vst [vmem:[%s284 + $0x8] sm:$0xff] %v287
          $region38: #{tpu_custom_call.1} parent=32 // loop_footer
            %s282 = sadd.s32 1, %s278
          $region39: #{tpu_custom_call.1} parent=32 // loop_footer_branch
            %277 = sbr.rel target = $region35
          $region40: #{tpu_custom_call.1} parent=32 // loop_exit
            _
        $region33: #{tpu_custom_call.1} parent=24 // pred_fallthru
          _
      $region25: #{tpu_custom_call.1} parent=20 // pred_fallthru
        _
      %305 = vnop
    $region21: #{tpu_custom_call.1} parent=1 // pred_fallthru
      _
    // Predicated region
    $region56: #{tpu_custom_call.1} parent=1 // pred_check
      _
    $region57: #{tpu_custom_call.1} parent=1 // pred_check_branch
      %307 = sbr.rel (0) target = $region59
    $region58: #{tpu_custom_call.1} parent=1 // pred_region
      _
    $region59: #{tpu_custom_call.1} parent=1 // pred_fallthru
      _
    %308 = vsyncpa [#allocation3], 1
    %309 = vsyncpa [#allocation5], 1

// kernel: tpu_custom_call.1
$region0: #{tpu_custom_call.1}
  #allocation0 [shape = 'u32[]', space=smem, size = 0x4, offset = 0x4, fixed_abs, tag = 'smem constant byte address 0x4 - core index']
  #allocation1 [shape = 'u32[144,128]{1,0:T(1,128)}', space=vmem, size = 0x12000, scoped, tag = 'internal scratch']
  %s0 = inlined_call_operand.hbm [shape: f32[16,32], index: 0, kind: input, shape index: {}]
  %s1 = inlined_call_operand.hbm [shape: f32[4,32], index: 1, kind: input, shape index: {}]
  %s2 = inlined_call_operand.vmem [shape: f32[16,4], index: 2, kind: output, shape index: {}]
  %s3 = sld [smem:[#allocation0]]
  $region60: #{tpu_custom_call.1} parent=0
    _
  %s5 = ssub.s32 1, %s3
  %s6 = scalar_select 0, %s5, %s3
  $region1: #{tpu_custom_call.1} parent=0
    #allocation2 [shape = 'u8[65536]{0}', space=vmem, size = 0x10000, scoped, tag = 'input window, operand 0, single buffered']
    #allocation3 [shape = 's32[1]{0}', space=sflag, size = 0x4, scoped, tag = 'scoped memory for tpu_custom_call.1']
    #allocation4 [shape = 'u8[2048]{0}', space=vmem, size = 0x800, scoped, tag = 'input window, operand 1, single buffered']
    #allocation5 [shape = 's32[1]{0}', space=sflag, size = 0x4, scoped, tag = 'scoped memory for tpu_custom_call.1']
    #allocation6 [shape = 'u8[65536]{0}', space=vmem, size = 0x10000, scoped, tag = 'output window, operand 0, single buffered']
    %7 = vsyncpa [#allocation3], 0
    %8 = vsyncpa [#allocation5], 0
    // Predicated region
    $region2: #{tpu_custom_call.1} parent=1 // pred_check
      _
    $region3: #{tpu_custom_call.1} parent=1 // pred_check_branch
      %10 = sbr.rel (0) target = $region5
    $region4: #{tpu_custom_call.1} parent=1 // pred_region
      %s12 = ssub.s32 2048, 256
      %13 = vsyncadd [#allocation3], %s12
      %s14 = sshll.u32 [#allocation2], 4
      %s15 = int_to_ptr.vmem [resolvable:$true] %s14
      %20 = dma.hbm_to_vmem [thread:$0]  %s0, 256, %s15, [#allocation3], 128, 128, 8
    $region5: #{tpu_custom_call.1} parent=1 // pred_fallthru
      _
    // Predicated region
    $region6: #{tpu_custom_call.1} parent=1 // pred_check
      _
    $region7: #{tpu_custom_call.1} parent=1 // pred_check_branch
      %22 = sbr.rel (0) target = $region9
    $region8: #{tpu_custom_call.1} parent=1 // pred_region
      %s24 = ssub.s32 64, 64
      %25 = vsyncadd [#allocation5], %s24
      %s27 = sshll.u32 [#allocation4], 4
      %s28 = int_to_ptr.vmem [resolvable:$true] %s27
      %30 = dma.hbm_to_vmem [thread:$0]  %s1, 64, %s28, [#allocation5]
    $region9: #{tpu_custom_call.1} parent=1 // pred_fallthru
      _
    // Predicated region
    $region10: #{tpu_custom_call.1} parent=1 // pred_check
      _
    $region11: #{tpu_custom_call.1} parent=1 // pred_check_branch
      %32 = sbr.rel (0) target = $region13
    $region12: #{tpu_custom_call.1} parent=1 // pred_region
      %33 = dma.done [#allocation3], 2048
    $region13: #{tpu_custom_call.1} parent=1 // pred_fallthru
      _
    // Predicated region
    $region14: #{tpu_custom_call.1} parent=1 // pred_check
      _
    $region15: #{tpu_custom_call.1} parent=1 // pred_check_branch
      %35 = sbr.rel (0) target = $region17
    $region16: #{tpu_custom_call.1} parent=1 // pred_region
      %36 = dma.done [#allocation5], 64
    $region17: #{tpu_custom_call.1} parent=1 // pred_fallthru
      _
    %v37 = vld [vmem:[#allocation2] sm:$0xff]
    %v38 = vld [vmem:[#allocation2 + $0x8] sm:$0xff]
    %v39 = vld [vmem:[#allocation2 + $0x10] sm:$0xff]
    %v40 = vld [vmem:[#allocation2 + $0x18] sm:$0xff]
    %v41 = vld [vmem:[#allocation2 + $0x20] sm:$0xff]
    %v42 = vld [vmem:[#allocation2 + $0x28] sm:$0xff]
    %v43 = vld [vmem:[#allocation2 + $0x30] sm:$0xff]
    %v44 = vld [vmem:[#allocation2 + $0x38] sm:$0xff]
    %v45 = vld [vmem:[#allocation2 + $0x40] sm:$0xff]
    %v46 = vld [vmem:[#allocation2 + $0x48] sm:$0xff]
    %v47 = vld [vmem:[#allocation2 + $0x50] sm:$0xff]
    %v48 = vld [vmem:[#allocation2 + $0x58] sm:$0xff]
    %v49 = vld [vmem:[#allocation2 + $0x60] sm:$0xff]
    %v50 = vld [vmem:[#allocation2 + $0x68] sm:$0xff]
    %v51 = vld [vmem:[#allocation2 + $0x70] sm:$0xff]
    %v52 = vld [vmem:[#allocation2 + $0x78] sm:$0xff]
    %v53 = vld [vmem:[#allocation4] sm:$0xf]
    %vm54 = vcmask 261120
    %v56 = vsel %vm54, %v37, 0
    %v59 = vsel %vm54, %v38, 0
    %v62 = vsel %vm54, %v39, 0
    %v65 = vsel %vm54, %v40, 0
    %v68 = vsel %vm54, %v41, 0
    %v71 = vsel %vm54, %v42, 0
    %v74 = vsel %vm54, %v43, 0
    %v77 = vsel %vm54, %v44, 0
    %v80 = vsel %vm54, %v45, 0
    %v83 = vsel %vm54, %v46, 0
    %v86 = vsel %vm54, %v47, 0
    %v89 = vsel %vm54, %v48, 0
    %v92 = vsel %vm54, %v49, 0
    %v95 = vsel %vm54, %v50, 0
    %v98 = vsel %vm54, %v51, 0
    %v101 = vsel %vm54, %v52, 0
    %v104 = vsel %vm54, %v53, 0
    %106 = vmatprep.subr.mxu0 0.0
    %107 = vmatpush1.xpose.msra.mxu0 %v104
    %108 = vmatprep.subr.mxu0 0.0
    %109 = vmatpush1.xpose.msra.mxu0 0.0
    %110 = vmatprep.subr.mxu0 0.0
    %111 = vmatpush1.xpose.msra.mxu0 0.0
    %112 = vmatprep.subr.mxu0 0.0
    %113 = vmatpush1.xpose.msra.mxu0 0.0
    %114 = vmatprep.subr.mxu0 0.0
    %115 = vmatpush1.xpose.msra.mxu0 0.0
    %116 = vmatprep.subr.mxu0 0.0
    %117 = vmatpush1.xpose.msra.mxu0 0.0
    %118 = vmatprep.subr.mxu0 0.0
    %119 = vmatpush1.xpose.msra.mxu0 0.0
    %120 = vmatprep.subr.mxu0 0.0
    %121 = vmatpush1.xpose.msra.mxu0 0.0
    %122 = vmatprep.subr.mxu0 0.0
    %123 = vmatpush1.xpose.msra.mxu0 0.0
    %124 = vmatprep.subr.mxu0 0.0
    %125 = vmatpush1.xpose.msra.mxu0 0.0
    %126 = vmatprep.subr.mxu0 0.0
    %127 = vmatpush1.xpose.msra.mxu0 0.0
    %128 = vmatprep.subr.mxu0 0.0
    %129 = vmatpush1.xpose.msra.mxu0 0.0
    %130 = vmatprep.subr.mxu0 0.0
    %131 = vmatpush1.xpose.msra.mxu0 0.0
    %132 = vmatprep.subr.mxu0 0.0
    %133 = vmatpush1.xpose.msra.mxu0 0.0
    %134 = vmatprep.subr.mxu0 0.0
    %135 = vmatpush1.xpose.msra.mxu0 0.0
    %136 = vmatprep.subr.mxu0 0.0
    %137 = vmatpush1.xpose.msra.mxu0 0.0
    %138 = vmatprep.subr.mxu0 0.0
    %139 = vmatpush1.xpose.msra.mxu0 0.0
    %140 = vmatprep.subr.mxu0 0.0
    %141 = vmatpush1.xpose.msra.mxu0 0.0
    %142 = vmatprep.subr.mxu0 0.0
    %143 = vmatpush1.xpose.msra.mxu0 0.0
    %144 = vmatprep.subr.mxu0 0.0
    %145 = vmatpush1.xpose.msra.mxu0 0.0
    %146 = vmatprep.subr.mxu0 0.0
    %147 = vmatpush1.xpose.msra.mxu0 0.0
    %148 = vmatprep.subr.mxu0 0.0
    %149 = vmatpush1.xpose.msra.mxu0 0.0
    %150 = vmatprep.subr.mxu0 0.0
    %151 = vmatpush1.xpose.msra.mxu0 0.0
    %152 = vmatprep.subr.mxu0 0.0
    %153 = vmatpush1.xpose.msra.mxu0 0.0
    %154 = vmatprep.subr.mxu0 0.0
    %155 = vmatpush1.xpose.msra.mxu0 0.0
    %156 = vmatprep.subr.mxu0 0.0
    %157 = vmatpush1.xpose.msra.mxu0 0.0
    %158 = vmatprep.subr.mxu0 0.0
    %159 = vmatpush1.xpose.msra.mxu0 0.0
    %160 = vmatprep.subr.mxu0 0.0
    %161 = vmatpush1.xpose.msra.mxu0 0.0
    %162 = vmatprep.subr.mxu0 0.0
    %163 = vmatpush1.xpose.msra.mxu0 0.0
    %164 = vmatprep.subr.mxu0 0.0
    %165 = vmatpush1.xpose.msra.mxu0 0.0
    %166 = vmatprep.subr.mxu0 0.0
    %167 = vmatpush1.xpose.msra.mxu0 0.0
    %168 = vmatprep.subr.mxu0 0.0
    %169 = vmatpush1.xpose.msra.mxu0 0.0
    %170 = vmatprep.mubr.f32.mxu0 0.0
    %171 = vmatmul.mubr.f32.gmra.mrb[0].mxu0 %v56
    %v172 = vpop.f32.mrb[0].mxu0
    %v173 = vadd.f32 0.0, %v172
    %v174 = vpop.f32.mrb[0].mxu0
    %175 = vmatprep.mubr.f32.mxu0 0.0
    %176 = vmatmul.mubr.f32.gmra.mrb[0].mxu0 %v59
    %v177 = vpop.f32.mrb[0].mxu0
    %v178 = vadd.f32 0.0, %v177
    %v179 = vpop.f32.mrb[0].mxu0
    %180 = vmatprep.mubr.f32.mxu0 0.0
    %181 = vmatmul.mubr.f32.gmra.mrb[0].mxu0 %v62
    %v182 = vpop.f32.mrb[0].mxu0
    %v183 = vadd.f32 0.0, %v182
    %v184 = vpop.f32.mrb[0].mxu0
    %185 = vmatprep.mubr.f32.mxu0 0.0
    %186 = vmatmul.mubr.f32.gmra.mrb[0].mxu0 %v65
    %v187 = vpop.f32.mrb[0].mxu0
    %v188 = vadd.f32 0.0, %v187
    %v189 = vpop.f32.mrb[0].mxu0
    %190 = vmatprep.mubr.f32.mxu0 0.0
    %191 = vmatmul.mubr.f32.gmra.mrb[0].mxu0 %v68
    %v192 = vpop.f32.mrb[0].mxu0
    %v193 = vadd.f32 0.0, %v192
    %v194 = vpop.f32.mrb[0].mxu0
    %195 = vmatprep.mubr.f32.mxu0 0.0
    %196 = vmatmul.mubr.f32.gmra.mrb[0].mxu0 %v71
    %v197 = vpop.f32.mrb[0].mxu0
    %v198 = vadd.f32 0.0, %v197
    %v199 = vpop.f32.mrb[0].mxu0
    %200 = vmatprep.mubr.f32.mxu0 0.0
    %201 = vmatmul.mubr.f32.gmra.mrb[0].mxu0 %v74
    %v202 = vpop.f32.mrb[0].mxu0
    %v203 = vadd.f32 0.0, %v202
    %v204 = vpop.f32.mrb[0].mxu0
    %205 = vmatprep.mubr.f32.mxu0 0.0
    %206 = vmatmul.mubr.f32.gmra.mrb[0].mxu0 %v77
    %v207 = vpop.f32.mrb[0].mxu0
    %v208 = vadd.f32 0.0, %v207
    %v209 = vpop.f32.mrb[0].mxu0
    %210 = vmatprep.mubr.f32.mxu0 0.0
    %211 = vmatmul.mubr.f32.gmra.mrb[0].mxu0 %v80
    %v212 = vpop.f32.mrb[0].mxu0
    %v213 = vadd.f32 0.0, %v212
    %v214 = vpop.f32.mrb[0].mxu0
    %215 = vmatprep.mubr.f32.mxu0 0.0
    %216 = vmatmul.mubr.f32.gmra.mrb[0].mxu0 %v83
    %v217 = vpop.f32.mrb[0].mxu0
    %v218 = vadd.f32 0.0, %v217
    %v219 = vpop.f32.mrb[0].mxu0
    %220 = vmatprep.mubr.f32.mxu0 0.0
    %221 = vmatmul.mubr.f32.gmra.mrb[0].mxu0 %v86
    %v222 = vpop.f32.mrb[0].mxu0
    %v223 = vadd.f32 0.0, %v222
    %v224 = vpop.f32.mrb[0].mxu0
    %225 = vmatprep.mubr.f32.mxu0 0.0
    %226 = vmatmul.mubr.f32.gmra.mrb[0].mxu0 %v89
    %v227 = vpop.f32.mrb[0].mxu0
    %v228 = vadd.f32 0.0, %v227
    %v229 = vpop.f32.mrb[0].mxu0
    %230 = vmatprep.mubr.f32.mxu0 0.0
    %231 = vmatmul.mubr.f32.gmra.mrb[0].mxu0 %v92
    %v232 = vpop.f32.mrb[0].mxu0
    %v233 = vadd.f32 0.0, %v232
    %v234 = vpop.f32.mrb[0].mxu0
    %235 = vmatprep.mubr.f32.mxu0 0.0
    %236 = vmatmul.mubr.f32.gmra.mrb[0].mxu0 %v95
    %v237 = vpop.f32.mrb[0].mxu0
    %v238 = vadd.f32 0.0, %v237
    %v239 = vpop.f32.mrb[0].mxu0
    %240 = vmatprep.mubr.f32.mxu0 0.0
    %241 = vmatmul.mubr.f32.gmra.mrb[0].mxu0 %v98
    %v242 = vpop.f32.mrb[0].mxu0
    %v243 = vadd.f32 0.0, %v242
    %v244 = vpop.f32.mrb[0].mxu0
    %245 = vmatprep.mubr.f32.mxu0 0.0
    %246 = vmatmul.mubr.f32.gmra.mrb[0].mxu0 %v101
    %v247 = vpop.f32.mrb[0].mxu0
    %v248 = vadd.f32 0.0, %v247
    %v249 = vpop.f32.mrb[0].mxu0
    %250 = vdwg.mxu0
    %vm251 = vcmask 31744
    %252 = vst.msk [vmem:[#allocation6] sm:$0xff] %vm251, %v173
    %253 = vst.msk [vmem:[#allocation6 + $0x8] sm:$0xff] %vm251, %v178
    %254 = vst.msk [vmem:[#allocation6 + $0x10] sm:$0xff] %vm251, %v183
    %255 = vst.msk [vmem:[#allocation6 + $0x18] sm:$0xff] %vm251, %v188
    %256 = vst.msk [vmem:[#allocation6 + $0x20] sm:$0xff] %vm251, %v193
    %257 = vst.msk [vmem:[#allocation6 + $0x28] sm:$0xff] %vm251, %v198
    %258 = vst.msk [vmem:[#allocation6 + $0x30] sm:$0xff] %vm251, %v203
    %259 = vst.msk [vmem:[#allocation6 + $0x38] sm:$0xff] %vm251, %v208
    %260 = vst.msk [vmem:[#allocation6 + $0x40] sm:$0xff] %vm251, %v213
    %261 = vst.msk [vmem:[#allocation6 + $0x48] sm:$0xff] %vm251, %v218
    %262 = vst.msk [vmem:[#allocation6 + $0x50] sm:$0xff] %vm251, %v223
    %263 = vst.msk [vmem:[#allocation6 + $0x58] sm:$0xff] %vm251, %v228
    %264 = vst.msk [vmem:[#allocation6 + $0x60] sm:$0xff] %vm251, %v233
    %265 = vst.msk [vmem:[#allocation6 + $0x68] sm:$0xff] %vm251, %v238
    %266 = vst.msk [vmem:[#allocation6 + $0x70] sm:$0xff] %vm251, %v243
    %267 = vst.msk [vmem:[#allocation6 + $0x78] sm:$0xff] %vm251, %v248
    // Predicated region
    $region18: #{tpu_custom_call.1} parent=1 // pred_check
      _
    $region19: #{tpu_custom_call.1} parent=1 // pred_check_branch
      %269 = sbr.rel (0) target = $region21
    $region20: #{tpu_custom_call.1} parent=1 // pred_region
      // Predicated region
      $region22: #{tpu_custom_call.1} parent=20 // pred_check
        _
      $region23: #{tpu_custom_call.1} parent=20 // pred_check_branch
        %271 = sbr.rel (0) target = $region25
      $region24: #{tpu_custom_call.1} parent=20 // pred_region
        // Predicated region
        $region26: #{tpu_custom_call.1} parent=24 // pred_check
          _
        $region27: #{tpu_custom_call.1} parent=24 // pred_check_branch
          %273 = sbr.rel (0) target = $region29
        $region28: #{tpu_custom_call.1} parent=24 // pred_region
          // Predicated region
          $region41: #{tpu_custom_call.1} parent=28 // pred_check
            _
          $region42: #{tpu_custom_call.1} parent=28 // pred_check_branch
            %290 = sbr.rel (0) target = $region44
          $region43: #{tpu_custom_call.1} parent=28 // pred_region
            loop: start=0, step=1, limit=1
            $region45: #{tpu_custom_call.1} parent=43 // loop_pre_header
              _
            $region46: #{tpu_custom_call.1} parent=43 // loop_header
              %s292 = sphi 0, %s296
              %p293 = scmp.ge.s32.totalorder %s292, 1
              %s297 = sphi [#allocation6], [#allocation6]
              %s298 = sphi %s2, %s2
            $region47: #{tpu_custom_call.1} parent=43 // loop_header_branch
              %295 = sbr.rel (%p293) target = $region51
            $region48: #{tpu_custom_call.1} parent=43 // loop_body
              %v299 = vld [vmem:[%s297] sm:$0xff]
              %300 = vst [vmem:[%s298] sm:$0xff] %v299
              %v301 = vld [vmem:[%s297 + $0x8] sm:$0xff]
              %302 = vst [vmem:[%s298 + $0x8] sm:$0xff] %v301
            $region49: #{tpu_custom_call.1} parent=43 // loop_footer
              %s296 = sadd.s32 1, %s292
            $region50: #{tpu_custom_call.1} parent=43 // loop_footer_branch
              %291 = sbr.rel target = $region46
            $region51: #{tpu_custom_call.1} parent=43 // loop_exit
              _
          $region44: #{tpu_custom_call.1} parent=28 // pred_fallthru
            _
          // Predicated region
          $region52: #{tpu_custom_call.1} parent=28 // pred_check
            _
          $region53: #{tpu_custom_call.1} parent=28 // pred_check_branch
            %304 = sbr.rel target = $region55
          $region54: #{tpu_custom_call.1} parent=28 // pred_region
            _
          $region55: #{tpu_custom_call.1} parent=28 // pred_fallthru
            _
        $region29: #{tpu_custom_call.1} parent=24 // pred_fallthru
          _
        // Predicated region
        $region30: #{tpu_custom_call.1} parent=24 // pred_check
          _
        $region31: #{tpu_custom_call.1} parent=24 // pred_check_branch
          %275 = sbr.rel target = $region33
        $region32: #{tpu_custom_call.1} parent=24 // pred_region
          loop: start=0, step=1, limit=1
          $region34: #{tpu_custom_call.1} parent=32 // loop_pre_header
            _
          $region35: #{tpu_custom_call.1} parent=32 // loop_header
            %s278 = sphi 0, %s282
            %p279 = scmp.ge.s32.totalorder %s278, 1
            %s283 = sphi [#allocation6], [#allocation6]
            %s284 = sphi %s2, %s2
          $region36: #{tpu_custom_call.1} parent=32 // loop_header_branch
            %281 = sbr.rel (%p279) target = $region40
          $region37: #{tpu_custom_call.1} parent=32 // loop_body
            %v285 = vld [vmem:[%s283] sm:$0xff]
            %286 = vst [vmem:[%s284] sm:$0xff] %v285
            %v287 = vld [vmem:[%s283 + $0x8] sm:$0xff]
            %288 = vst [vmem:[%s284 + $0x8] sm:$0xff] %v287
          $region38: #{tpu_custom_call.1} parent=32 // loop_footer
            %s282 = sadd.s32 1, %s278
          $region39: #{tpu_custom_call.1} parent=32 // loop_footer_branch
            %277 = sbr.rel target = $region35
          $region40: #{tpu_custom_call.1} parent=32 // loop_exit
            _
        $region33: #{tpu_custom_call.1} parent=24 // pred_fallthru
          _
      $region25: #{tpu_custom_call.1} parent=20 // pred_fallthru
        _
      %305 = vnop
    $region21: #{tpu_custom_call.1} parent=1 // pred_fallthru
      _
    // Predicated region
    $region56: #{tpu_custom_call.1} parent=1 // pred_check
      _
    $region57: #{tpu_custom_call.1} parent=1 // pred_check_branch
      %307 = sbr.rel (0) target = $region59
    $region58: #{tpu_custom_call.1} parent=1 // pred_region
      _
    $region59: #{tpu_custom_call.1} parent=1 // pred_fallthru
      _
    %308 = vsyncpa [#allocation3], 1
    %309 = vsyncpa [#allocation5], 1

</llo_original>
